<compile_context>
chip_gen: v7x
topology: tpu7x:2x2x1
jax: 0.10.0
libtpu: 0.0.40
codegen_flags: <defaults>
</compile_context>

<pallas_src>
import functools

import jax
import jax.numpy as jnp
from jax.experimental import pallas as pl
from jax.experimental.pallas import tpu as pltpu


def _round_up(x, m):
    return ((x + m - 1) // m) * m


def _plan_nk(in_features, out_features):
    """Padded K and the lane-dense N tile (independent of batch)."""
    p_in = _round_up(in_features, 128)
    tn = min(512, _round_up(out_features, 128))
    p_out = _round_up(out_features, tn)
    return p_in, tn, p_out


def _plan_m(batch, p_in, tn, budget_bytes=40 * 1024 * 1024):
    """Batch tile: as large as possible while the working set fits VMEM.

    Budget is conservative enough for v7x's 64 MiB physical VMEM and leaves
    v5e/v6e (128 MiB) plenty of headroom once double-buffered.
    """
    tm = min(512, _round_up(batch, 8))

    def footprint(tm_):
        # double-buffered x/w/bias/idx blocks + the resident f32 output block
        return 4 * (2 * (tm_ * p_in + p_in * tn + 2 * tn + tm_) + tm_ * tn)

    while footprint(tm) > budget_bytes and tm > 8:
        tm = max(8, tm // 2)
    # NOTE: for very large in_features a K-tiled accumulation grid would be
    # needed; for MLP-sized layers (Titanic model) full-K blocks always fit.
    p_b = _round_up(batch, tm)
    return tm, p_b, footprint(tm)


def _custom_linear_kernel(seed_ref, x_ref, w_ref, b_ref, row_ref, col_ref,
                          o_ref, *, p, training):
    # Single MXU dot over the full (padded) K, accumulated in f32.
    y = jnp.dot(x_ref[...], w_ref[...], preferred_element_type=jnp.float32)
    y = jnp.maximum(y + b_ref[...], 0.0)                      # bias + ReLU
    if training and p > 0.0:
        # Counter-based dropout: lowbias32-style hash of (seed, global index).
        # (tm,1) row offsets + (1,tn) col ids broadcast to the full tile.
        idx = (row_ref[...] + col_ref[...]).astype(jnp.uint32)
        h = idx ^ seed_ref[0].astype(jnp.uint32)
        h = (h ^ (h >> 16)) * jnp.uint32(0x7FEB352D)
        h = (h ^ (h >> 15)) * jnp.uint32(0x846CA68B)
        h = h ^ (h >> 16)
        r24 = (h >> 8).astype(jnp.int32)          # uniform in [0, 2**24)
        thresh = jnp.int32(int(round(p * (1 << 24))))
        keep = r24 >= thresh                       # P(keep) = 1 - p
        y = jnp.where(keep, y * jnp.float32(1.0 / (1.0 - p)), 0.0)
    o_ref[...] = y.astype(o_ref.dtype)


def prepare_linear_params(weight, bias):
    """One-time parameter setup.

    PyTorch stores weight as (Out, In); transpose to (In, Out) and zero-pad
    weight/bias to MXU/lane-aligned shapes ONCE here, so no per-call HBM
    transpose / pad traffic is paid in the forward path.
    """
    out_features, in_features = weight.shape
    p_in, _, p_out = _plan_nk(in_features, out_features)
    w_t = jnp.asarray(weight).T                                 # (In, Out)
    w_p = jnp.zeros((p_in, p_out), w_t.dtype).at[
        :in_features, :out_features].set(w_t)
    b_p = jnp.zeros((1, p_out), bias.dtype).at[0, :out_features].set(bias)
    return w_p, b_p


def custom_linear(x, w_p, b_p, seed, *, out_features, p=0.5, training=True):
    """Pallas implementation of CustomLinear.forward.

    x:    (B, In)        float32
    w_p:  (pIn, pOut)    float32 -- from prepare_linear_params (transposed+padded)
    b_p:  (1, pOut)      float32 -- from prepare_linear_params
    seed: int32 scalar   -- dropout PRNG seed
    """
    if not (0.0 <= p < 1.0):
        raise ValueError("dropout p must be in [0, 1)")

    B, In = x.shape
    p_in, tn, p_out = _plan_nk(In, out_features)
    assert w_p.shape == (p_in, p_out), (w_p.shape, (p_in, p_out))
    assert b_p.shape == (1, p_out), b_p.shape
    tm, p_b, foot = _plan_m(B, p_in, tn)

    x_p = x if (p_b, p_in) == (B, In) else jnp.pad(
        x, ((0, p_b - B), (0, p_in - In)))

    # Tiny global-index strips for the dropout hash (no program_id in-kernel).
    row_off = (jnp.arange(p_b, dtype=jnp.int32) * p_out).reshape(p_b, 1)
    col_ids = jnp.arange(p_out, dtype=jnp.int32).reshape(1, p_out)

    seed_arr = jnp.asarray(seed, dtype=jnp.int32).reshape((1,))

    grid = (p_b // tm, p_out // tn)
    kernel = functools.partial(_custom_linear_kernel, p=p, training=training)

    vmem_limit = int(min(max(foot + foot // 2, 4 * 1024 * 1024),
                         60 * 1024 * 1024))
    flops = 2 * p_b * p_in * p_out
    bytes_accessed = 4 * (p_b * p_in * (p_out // tn)      # x re-read per N tile
                          + p_in * p_out * (p_b // tm)    # w re-read per M tile
                          + p_b * p_out + p_out + p_b)

    out_p = pl.pallas_call(
        kernel,
        out_shape=jax.ShapeDtypeStruct((p_b, p_out), x.dtype),
        grid_spec=pltpu.PrefetchScalarGridSpec(
            num_scalar_prefetch=1,                          # seed lands in SMEM
            grid=grid,
            in_specs=[
                pl.BlockSpec((tm, p_in), lambda i, j, s: (i, 0)),   # x
                pl.BlockSpec((p_in, tn), lambda i, j, s: (0, j)),   # w (In,Out)
                pl.BlockSpec((1, tn),    lambda i, j, s: (0, j)),   # bias
                pl.BlockSpec((tm, 1),    lambda i, j, s: (i, 0)),   # row offsets
                pl.BlockSpec((1, tn),    lambda i, j, s: (0, j)),   # col ids
            ],
            out_specs=pl.BlockSpec((tm, tn), lambda i, j, s: (i, j)),
        ),
        compiler_params=pltpu.CompilerParams(
            dimension_semantics=("parallel", "parallel"),
            vmem_limit_bytes=vmem_limit,
        ),
        cost_estimate=pl.CostEstimate(flops=flops, transcendentals=0,
                                      bytes_accessed=bytes_accessed),
    )(seed_arr, x_p, w_p, b_p, row_off, col_ids)

    return out_p[:B, :out_features]


if __name__ == "__main__":
    # Small shapes consistent with a Titanic-style MLP layer.
    batch, in_features, out_features = 8, 32, 16
    p = 0.5

    key = jax.random.PRNGKey(0)
    kx, kw, kb = jax.random.split(key, 3)

    x = jax.random.normal(kx, (batch, in_features), dtype=jnp.float32)
    # Deterministic init mimicking nn.Linear's uniform(-1/sqrt(in), 1/sqrt(in))
    bound = 1.0 / (in_features ** 0.5)
    weight = jax.random.uniform(kw, (out_features, in_features),
                                minval=-bound, maxval=bound, dtype=jnp.float32)
    bias = jax.random.uniform(kb, (out_features,),
                              minval=-bound, maxval=bound, dtype=jnp.float32)

    # One-time parameter setup: transpose + pad outside the per-call path.
    w_p, b_p = prepare_linear_params(weight, bias)

    fwd = jax.jit(custom_linear,
                  static_argnames=("out_features", "p", "training"))
    out = fwd(x, w_p, b_p, jnp.int32(1234),
              out_features=out_features, p=p, training=True)
    out = jax.block_until_ready(out)

    # Sanity checks:
    #  - every non-zero output equals relu(x @ W^T + b) / (1 - p)
    #  - dropout actually dropped something
    ref = jnp.maximum(x @ weight.T + bias, 0.0) / (1.0 - p)
    nonzero = out != 0.0
    assert out.shape == (batch, out_features)
    assert bool(jnp.all(jnp.where(nonzero, jnp.abs(out - ref) < 1e-3, True)))
    assert bool(jnp.any((ref > 0.0) & (out == 0.0)))

    print("KERNEL_OK")
</pallas_src>

<mosaic_0001>
module attributes {stable_mosaic.version = 11 : i64} {
  func.func @_custom_linear_kernel(%arg0: i32, %arg1: i32, %arg2: memref<1xi32, #tpu.memory_space<smem>>, %arg3: memref<8x128xf32, #tpu.memory_space<vmem>>, %arg4: memref<128x128xf32, #tpu.memory_space<vmem>>, %arg5: memref<1x128xf32, #tpu.memory_space<vmem>>, %arg6: memref<8x1xi32, #tpu.memory_space<vmem>>, %arg7: memref<1x128xi32, #tpu.memory_space<vmem>>, %arg8: memref<8x128xf32, #tpu.memory_space<vmem>>) attributes {dimension_semantics = [#tpu.dimension_semantics<parallel>, #tpu.dimension_semantics<parallel>], iteration_bounds = array<i64: 1, 1>, scalar_prefetch = 1 : i64, scratch_operands = 0 : i64, tpu.core_type = #tpu.core_type<tc>, window_params = [{transform_indices = @transform_0, window_bounds = array<i64: 8, 128>}, {transform_indices = @transform_1, window_bounds = array<i64: 128, 128>}, {transform_indices = @transform_2, window_bounds = array<i64: 1, 128>}, {transform_indices = @transform_3, window_bounds = array<i64: 8, 1>}, {transform_indices = @transform_4, window_bounds = array<i64: 1, 128>}, {transform_indices = @transform_5, window_bounds = array<i64: 8, 128>}]} {
    %c0 = arith.constant 0 : index
    %c0_0 = arith.constant 0 : index
    %0 = vector.load %arg3[%c0, %c0_0] : memref<8x128xf32, #tpu.memory_space<vmem>>, vector<8x128xf32>
    %c0_1 = arith.constant 0 : index
    %c0_2 = arith.constant 0 : index
    %1 = vector.load %arg4[%c0_1, %c0_2] : memref<128x128xf32, #tpu.memory_space<vmem>>, vector<128x128xf32>
    %cst = arith.constant dense<0.000000e+00> : vector<8x128xf32>
    %2 = tpu.matmul %0, %1, %cst {dimension_numbers = #tpu.dot_dimension_numbers<[1], [0], [0], [1], [0, 0, 1, 1], [], []>} : vector<8x128xf32>, vector<128x128xf32>, vector<8x128xf32> -> vector<8x128xf32>
    %c0_3 = arith.constant 0 : index
    %c0_4 = arith.constant 0 : index
    %3 = vector.load %arg5[%c0_3, %c0_4] : memref<1x128xf32, #tpu.memory_space<vmem>>, vector<1x128xf32>
    %4 = vector.broadcast %3 : vector<1x128xf32> to vector<8x128xf32>
    %5 = arith.addf %2, %4 : vector<8x128xf32>
    %cst_5 = arith.constant 0.000000e+00 : f32
    %6 = vector.broadcast %cst_5 : f32 to vector<8x128xf32>
    %7 = arith.maximumf %5, %6 : vector<8x128xf32>
    %c0_6 = arith.constant 0 : index
    %c0_7 = arith.constant 0 : index
    %8 = vector.load %arg6[%c0_6, %c0_7] : memref<8x1xi32, #tpu.memory_space<vmem>>, vector<8x1xi32>
    %c0_8 = arith.constant 0 : index
    %c0_9 = arith.constant 0 : index
    %9 = vector.load %arg7[%c0_8, %c0_9] : memref<1x128xi32, #tpu.memory_space<vmem>>, vector<1x128xi32>
    %10 = vector.broadcast %8 : vector<8x1xi32> to vector<8x128xi32>
    %11 = vector.broadcast %9 : vector<1x128xi32> to vector<8x128xi32>
    %12 = arith.addi %10, %11 : vector<8x128xi32>
    %c0_10 = arith.constant 0 : index
    %13 = memref.load %arg2[%c0_10] : memref<1xi32, #tpu.memory_space<smem>>
    %14 = vector.broadcast %13 : i32 to vector<8x128xi32>
    %15 = arith.xori %12, %14 : vector<8x128xi32>
    %c16_i32 = arith.constant 16 : i32
    %16 = vector.broadcast %c16_i32 : i32 to vector<8x128xi32>
    %17 = arith.shrui %15, %16 : vector<8x128xi32>
    %18 = arith.xori %15, %17 : vector<8x128xi32>
    %c2146121005_i32 = arith.constant 2146121005 : i32
    %19 = vector.broadcast %c2146121005_i32 : i32 to vector<8x128xi32>
    %20 = arith.muli %18, %19 : vector<8x128xi32>
    %c15_i32 = arith.constant 15 : i32
    %21 = vector.broadcast %c15_i32 : i32 to vector<8x128xi32>
    %22 = arith.shrui %20, %21 : vector<8x128xi32>
    %23 = arith.xori %20, %22 : vector<8x128xi32>
    %c-2073254261_i32 = arith.constant -2073254261 : i32
    %24 = vector.broadcast %c-2073254261_i32 : i32 to vector<8x128xi32>
    %25 = arith.muli %23, %24 : vector<8x128xi32>
    %c16_i32_11 = arith.constant 16 : i32
    %26 = vector.broadcast %c16_i32_11 : i32 to vector<8x128xi32>
    %27 = arith.shrui %25, %26 : vector<8x128xi32>
    %28 = arith.xori %25, %27 : vector<8x128xi32>
    %c8_i32 = arith.constant 8 : i32
    %29 = vector.broadcast %c8_i32 : i32 to vector<8x128xi32>
    %30 = arith.shrui %28, %29 : vector<8x128xi32>
    %c8388608_i32 = arith.constant 8388608 : i32
    %31 = vector.broadcast %c8388608_i32 : i32 to vector<8x128xi32>
    %32 = arith.cmpi sge, %30, %31 : vector<8x128xi32>
    %cst_12 = arith.constant 2.000000e+00 : f32
    %33 = vector.broadcast %cst_12 : f32 to vector<8x128xf32>
    %34 = arith.mulf %7, %33 : vector<8x128xf32>
    %cst_13 = arith.constant 0.000000e+00 : f32
    %35 = vector.broadcast %cst_13 : f32 to vector<8x128xf32>
    %36 = arith.select %32, %34, %35 : vector<8x128xi1>, vector<8x128xf32>
    %c0_14 = arith.constant 0 : index
    %c0_15 = arith.constant 0 : index
    %37 = vector.load %arg8[%c0_14, %c0_15] : memref<8x128xf32, #tpu.memory_space<vmem>>, vector<8x128xf32>
    tpu.vector_store %arg8[%c0_14, %c0_15], %36 {strides = array<i32>} : memref<8x128xf32, #tpu.memory_space<vmem>>, vector<8x128xf32>,
    return
  }
  func.func @transform_0(%arg0: i32, %arg1: i32, %arg2: memref<1xi32, #tpu.memory_space<smem>>) -> (i32, i32) {
    %c0_i32 = arith.constant 0 : i32
    %c0_i32_0 = arith.constant 0 : i32
    return %arg0, %c0_i32 : i32, i32
  }
  func.func @transform_1(%arg0: i32, %arg1: i32, %arg2: memref<1xi32, #tpu.memory_space<smem>>) -> (i32, i32) {
    %c0_i32 = arith.constant 0 : i32
    %c0_i32_0 = arith.constant 0 : i32
    return %c0_i32, %arg1 : i32, i32
  }
  func.func @transform_2(%arg0: i32, %arg1: i32, %arg2: memref<1xi32, #tpu.memory_space<smem>>) -> (i32, i32) {
    %c0_i32 = arith.constant 0 : i32
    %c0_i32_0 = arith.constant 0 : i32
    return %c0_i32, %arg1 : i32, i32
  }
  func.func @transform_3(%arg0: i32, %arg1: i32, %arg2: memref<1xi32, #tpu.memory_space<smem>>) -> (i32, i32) {
    %c0_i32 = arith.constant 0 : i32
    %c0_i32_0 = arith.constant 0 : i32
    return %arg0, %c0_i32 : i32, i32
  }
  func.func @transform_4(%arg0: i32, %arg1: i32, %arg2: memref<1xi32, #tpu.memory_space<smem>>) -> (i32, i32) {
    %c0_i32 = arith.constant 0 : i32
    %c0_i32_0 = arith.constant 0 : i32
    return %c0_i32, %arg1 : i32, i32
  }
  func.func @transform_5(%arg0: i32, %arg1: i32, %arg2: memref<1xi32, #tpu.memory_space<smem>>) -> (i32, i32) {
    %c0_i32 = arith.constant 0 : i32
    return %arg0, %arg1 : i32, i32
  }
}

</mosaic_0001>

<llo_original>
// kernel: custom_linear.1
$region0: #{custom_linear.1}
  #allocation0 [shape = 'u32[]', space=smem, size = 0x4, offset = 0x4, fixed_abs, tag = 'smem constant byte address 0x4 - core index']
  #allocation1 [shape = 'u32[144,128]{1,0:T(1,128)}', space=vmem, size = 0x12000, scoped, tag = 'internal scratch']
  #allocation2 [shape = 's32[1]{0}', space=sflag, size = 0x4, scoped, tag = 'scoped memory for custom_linear.1']
  #allocation3 [shape = 's32[1]{0:T(128)S(6)}', space=smem, size = 0x200, scoped, tag = 'prefetched SMEM operand 0']
  %s0 = inlined_call_operand.<no memory space> [shape: s32[1], index: 0, kind: input, shape index: {}]
  %s1 = inlined_call_operand.vmem [shape: f32[8,128], index: 1, kind: input, shape index: {}]
  %s2 = inlined_call_operand.hbm [shape: f32[128,128], index: 2, kind: input, shape index: {}]
  %s3 = inlined_call_operand.vmem [shape: f32[1,128], index: 3, kind: input, shape index: {}]
  %s4 = inlined_call_operand.vmem [shape: s32[8,1], index: 4, kind: input, shape index: {}]
  %s5 = inlined_call_operand.vmem [shape: s32[1,128], index: 5, kind: input, shape index: {}]
  %s6 = inlined_call_operand.hbm [shape: f32[8,128], index: 6, kind: output, shape index: {}]
  %s7 = sld [smem:[#allocation0]]
  $region34: #{custom_linear.1} parent=0
    _
  %s9 = ssub.s32 1, %s7
  %s10 = scalar_select 0, %s9, %s7
  %11 = sst [smem:[#allocation3]] %s0
  $region1: #{custom_linear.1} parent=0
    #allocation4 [shape = 'u8[65536]{0}', space=vmem, size = 0x10000, scoped, tag = 'input window, operand 2, single buffered']
    #allocation5 [shape = 's32[1]{0}', space=sflag, size = 0x4, scoped, tag = 'scoped memory for custom_linear.1']
    #allocation6 [shape = 's32[1]{0}', space=sflag, size = 0x4, scoped, tag = 'scoped memory for custom_linear.1']
    #allocation7 [shape = 'u8[4096]{0}', space=vmem, size = 0x1000, scoped, tag = 'output window, operand 0, single buffered']
    %12 = vsyncpa [#allocation5], 0
    %13 = vsyncpa [#allocation6], 0
    // Predicated region
    $region2: #{custom_linear.1} parent=1 // pred_check
      _
    $region3: #{custom_linear.1} parent=1 // pred_check_branch
      %15 = sbr.rel (0) target = $region5
    $region4: #{custom_linear.1} parent=1 // pred_region
      _
    $region5: #{custom_linear.1} parent=1 // pred_fallthru
      _
    // Predicated region
    $region6: #{custom_linear.1} parent=1 // pred_check
      _
    $region7: #{custom_linear.1} parent=1 // pred_check_branch
      %17 = sbr.rel (0) target = $region9
    $region8: #{custom_linear.1} parent=1 // pred_region
      %s19 = ssub.s32 2048, 2048
      %20 = vsyncadd [#allocation5], %s19
      %s21 = sshll.u32 [#allocation4], 4
      %s22 = int_to_ptr.vmem [resolvable:$true] %s21
      %27 = dma.hbm_to_vmem [thread:$0]  %s2, 2048, %s22, [#allocation5], 128, 128, 8
    $region9: #{custom_linear.1} parent=1 // pred_fallthru
      _
    // Predicated region
    $region10: #{custom_linear.1} parent=1 // pred_check
      _
    $region11: #{custom_linear.1} parent=1 // pred_check_branch
      %29 = sbr.rel (0) target = $region13
    $region12: #{custom_linear.1} parent=1 // pred_region
      _
    $region13: #{custom_linear.1} parent=1 // pred_fallthru
      _
    // Predicated region
    $region14: #{custom_linear.1} parent=1 // pred_check
      _
    $region15: #{custom_linear.1} parent=1 // pred_check_branch
      %31 = sbr.rel (0) target = $region17
    $region16: #{custom_linear.1} parent=1 // pred_region
      _
    $region17: #{custom_linear.1} parent=1 // pred_fallthru
      _
    // Predicated region
    $region18: #{custom_linear.1} parent=1 // pred_check
      _
    $region19: #{custom_linear.1} parent=1 // pred_check_branch
      %33 = sbr.rel (0) target = $region21
    $region20: #{custom_linear.1} parent=1 // pred_region
      _
    $region21: #{custom_linear.1} parent=1 // pred_fallthru
      _
    // Predicated region
    $region22: #{custom_linear.1} parent=1 // pred_check
      _
    $region23: #{custom_linear.1} parent=1 // pred_check_branch
      %35 = sbr.rel (0) target = $region25
    $region24: #{custom_linear.1} parent=1 // pred_region
      %36 = dma.done [#allocation5], 2048
    $region25: #{custom_linear.1} parent=1 // pred_fallthru
      _
    %v37 = vld [vmem:[%s1] sm:$0xff]
    %v38 = vld [vmem:[#allocation4] sm:$0xff]
    %v39 = vld [vmem:[#allocation4 + $0x8] sm:$0xff]
    %v40 = vld [vmem:[#allocation4 + $0x10] sm:$0xff]
    %v41 = vld [vmem:[#allocation4 + $0x18] sm:$0xff]
    %v42 = vld [vmem:[#allocation4 + $0x20] sm:$0xff]
    %v43 = vld [vmem:[#allocation4 + $0x28] sm:$0xff]
    %v44 = vld [vmem:[#allocation4 + $0x30] sm:$0xff]
    %v45 = vld [vmem:[#allocation4 + $0x38] sm:$0xff]
    %v46 = vld [vmem:[#allocation4 + $0x40] sm:$0xff]
    %v47 = vld [vmem:[#allocation4 + $0x48] sm:$0xff]
    %v48 = vld [vmem:[#allocation4 + $0x50] sm:$0xff]
    %v49 = vld [vmem:[#allocation4 + $0x58] sm:$0xff]
    %v50 = vld [vmem:[#allocation4 + $0x60] sm:$0xff]
    %v51 = vld [vmem:[#allocation4 + $0x68] sm:$0xff]
    %v52 = vld [vmem:[#allocation4 + $0x70] sm:$0xff]
    %v53 = vld [vmem:[#allocation4 + $0x78] sm:$0xff]
    %v54 = vld [vmem:[%s3] sm:$0x1]
    %v56 = vlaneseq
    %v57 = vshrl.u32 %v56, 7
    %v58 = vsub.s32 0, %v57
    %v59 = vrot.slane %v54, %v58
    %61 = vmatprep.subr.mxu0 0.0
    %62 = vmatpush1.msra.mxu0 %v38
    %63 = vmatprep.subr.mxu0 0.0
    %64 = vmatpush1.msra.mxu0 %v39
    %65 = vmatprep.subr.mxu0 0.0
    %66 = vmatpush1.msra.mxu0 %v40
    %67 = vmatprep.subr.mxu0 0.0
    %68 = vmatpush1.msra.mxu0 %v41
    %69 = vmatprep.subr.mxu0 0.0
    %70 = vmatpush1.msra.mxu0 %v42
    %71 = vmatprep.subr.mxu0 0.0
    %72 = vmatpush1.msra.mxu0 %v43
    %73 = vmatprep.subr.mxu0 0.0
    %74 = vmatpush1.msra.mxu0 %v44
    %75 = vmatprep.subr.mxu0 0.0
    %76 = vmatpush1.msra.mxu0 %v45
    %77 = vmatprep.subr.mxu0 0.0
    %78 = vmatpush1.msra.mxu0 %v46
    %79 = vmatprep.subr.mxu0 0.0
    %80 = vmatpush1.msra.mxu0 %v47
    %81 = vmatprep.subr.mxu0 0.0
    %82 = vmatpush1.msra.mxu0 %v48
    %83 = vmatprep.subr.mxu0 0.0
    %84 = vmatpush1.msra.mxu0 %v49
    %85 = vmatprep.subr.mxu0 0.0
    %86 = vmatpush1.msra.mxu0 %v50
    %87 = vmatprep.subr.mxu0 0.0
    %88 = vmatpush1.msra.mxu0 %v51
    %89 = vmatprep.subr.mxu0 0.0
    %90 = vmatpush1.msra.mxu0 %v52
    %91 = vmatprep.subr.mxu0 0.0
    %92 = vmatpush1.msra.mxu0 %v53
    %93 = vmatprep.subr.mxu0 0.0
    %94 = vmatpush1.msra.mxu0 0.0
    %95 = vmatprep.subr.mxu0 0.0
    %96 = vmatpush1.msra.mxu0 0.0
    %97 = vmatprep.subr.mxu0 0.0
    %98 = vmatpush1.msra.mxu0 0.0
    %99 = vmatprep.subr.mxu0 0.0
    %100 = vmatpush1.msra.mxu0 0.0
    %101 = vmatprep.subr.mxu0 0.0
    %102 = vmatpush1.msra.mxu0 0.0
    %103 = vmatprep.subr.mxu0 0.0
    %104 = vmatpush1.msra.mxu0 0.0
    %105 = vmatprep.subr.mxu0 0.0
    %106 = vmatpush1.msra.mxu0 0.0
    %107 = vmatprep.subr.mxu0 0.0
    %108 = vmatpush1.msra.mxu0 0.0
    %109 = vmatprep.subr.mxu0 0.0
    %110 = vmatpush1.msra.mxu0 0.0
    %111 = vmatprep.subr.mxu0 0.0
    %112 = vmatpush1.msra.mxu0 0.0
    %113 = vmatprep.subr.mxu0 0.0
    %114 = vmatpush1.msra.mxu0 0.0
    %115 = vmatprep.subr.mxu0 0.0
    %116 = vmatpush1.msra.mxu0 0.0
    %117 = vmatprep.subr.mxu0 0.0
    %118 = vmatpush1.msra.mxu0 0.0
    %119 = vmatprep.subr.mxu0 0.0
    %120 = vmatpush1.msra.mxu0 0.0
    %121 = vmatprep.subr.mxu0 0.0
    %122 = vmatpush1.msra.mxu0 0.0
    %123 = vmatprep.subr.mxu0 0.0
    %124 = vmatpush1.msra.mxu0 0.0
    %125 = vmatprep.mubr.f32.mxu0 0.0
    %126 = vmatmul.mubr.f32.gmra.mrb[0].mxu0 %v37
    %v127 = vpop.f32.mrb[0].mxu0
    %v128 = vadd.f32 %v59, %v127
    %v129 = vpop.f32.mrb[0].mxu0
    %130 = vdwg.mxu0
    %v131 = vmax.f32 %v128, 0.0
    %v132 = vld [vmem:[%s4] sm:$0xff]
    %v133 = vld [vmem:[%s5] sm:$0x1]
    %134 = vset.pattern.permute.xlu0 0
    %135 = vperm.xlu0 %134, %v132
    %v136 = vpop.permute.xlu0 %135
    %v137 = vlaneseq
    %v138 = vshrl.u32 %v137, 7
    %v139 = vsub.s32 0, %v138
    %v140 = vrot.slane %v133, %v139
    %v141 = vadd.s32 %v136, %v140
    %s142 = sld [smem:[#allocation3]]
    %v143 = vstv %s142
    %v144 = vxor.u32 %v141, %v143
    %v145 = vshrl.u32 %v144, 16
    %v146 = vxor.u32 %v144, %v145
    %v147 = vmul.u32 %v146, 2146121005
    %v148 = vshrl.u32 %v147, 15
    %v149 = vxor.u32 %v147, %v148
    %v150 = vmul.u32 %v149, 2221713035
    %v151 = vshrl.u32 %v150, 16
    %v152 = vxor.u32 %v150, %v151
    %v153 = vshrl.u32 %v152, 8
    %vm154 = vcmp.ge.s32.totalorder %v153, 8388608
    %v155 = vmul.f32 %v131, 2.0
    %v156 = vsel %vm154, %v155, 0.0
    %157 = vst [vmem:[#allocation7] sm:$0xff] %v156
    // Predicated region
    $region26: #{custom_linear.1} parent=1 // pred_check
      _
    $region27: #{custom_linear.1} parent=1 // pred_check_branch
      %159 = sbr.rel (0) target = $region29
    $region28: #{custom_linear.1} parent=1 // pred_region
      %s161 = ssub.s32 128, 128
      %162 = vsyncadd [#allocation6], %s161
      %s164 = sshll.u32 [#allocation7], 4
      %s165 = int_to_ptr.vmem [resolvable:$true] %s164
      %167 = dma.vmem_to_hbm [thread:$0]  %s165, 128, %s6, [#allocation6]
    $region29: #{custom_linear.1} parent=1 // pred_fallthru
      _
    // Predicated region
    $region30: #{custom_linear.1} parent=1 // pred_check
      _
    $region31: #{custom_linear.1} parent=1 // pred_check_branch
      %169 = sbr.rel (0) target = $region33
    $region32: #{custom_linear.1} parent=1 // pred_region
      %170 = dma.done [#allocation6], 128
    $region33: #{custom_linear.1} parent=1 // pred_fallthru
      _
    %171 = vsyncpa [#allocation5], 1
    %172 = vsyncpa [#allocation6], 1

</llo_original>
